<compile_context>
chip_gen: v7x
topology: tpu7x:2x2x1
jax: 0.10.0
libtpu: 0.0.40
codegen_flags: <defaults>
</compile_context>

<pallas_src>
import jax
import jax.numpy as jnp
from jax.experimental import pallas as pl
from jax.experimental.pallas import tpu as pltpu


def ffm_pair_kernel(xT_ref, waT_ref, wbT_ref, ba_ref, bb_ref, out_ref):
    """One batch tile: logit = sum_p (W_A^T x + b_A)_p * (W_B^T x + b_B)_p.

    xT_ref : (F, TB)   bf16   -- batch in lanes
    waT_ref: (Pp, F)   bf16   -- pair weights, A side (resident)
    wbT_ref: (Pp, F)   bf16   -- pair weights, B side (resident)
    ba_ref : (Pp, 1)   f32    -- pair biases, A side (linear bias folded in)
    bb_ref : (Pp, 1)   f32    -- pair biases, B side (const 1 for linear column)
    out_ref: (1, TB)   f32    -- lane-dense sigmoid output row
    """
    xT = xT_ref[...]                                                     # (F, TB) bf16
    a = jnp.dot(waT_ref[...], xT, preferred_element_type=jnp.float32)    # (Pp, TB) f32
    a = a + ba_ref[...]                                                  # lane broadcast
    b = jnp.dot(wbT_ref[...], xT, preferred_element_type=jnp.float32)    # (Pp, TB) f32
    b = b + bb_ref[...]
    logit = jnp.sum(a * b, axis=0, keepdims=True)                        # (1, TB)
    out_ref[...] = jax.nn.sigmoid(logit).astype(out_ref.dtype)


def _prepare_pair_params(w_lin, b_lin, w_emb, b_emb):
    """Build the (Pp, F) pair-weight matrices / (Pp, 1) biases once, wrapper-side.

    w_lin: (F, 1), b_lin: (1, 1), w_emb: (K, F, D), b_emb: (K, 1, D)
    (i.e. nn.Linear parameters pre-transposed so E_k = x @ w_emb[k] + b_emb[k]).
    """
    K, F, D = w_emb.shape
    if D < K:
        raise ValueError("FFM indexing requires embed_dim >= n_latent_factors")

    idx_i, idx_j = [], []
    for i in range(K - 1):
        for j in range(i + 1, K):
            idx_i.append(i)
            idx_j.append(j)
    pi = jnp.asarray(idx_i, jnp.int32)
    pj = jnp.asarray(idx_j, jnp.int32)
    P = len(idx_i)                                     # K*(K-1)/2

    # A_p(x) = E_j(x)[:, i],  B_p(x) = E_i(x)[:, j]
    wa = jnp.transpose(w_emb[pj, :, pi])               # (F, P)
    wb = jnp.transpose(w_emb[pi, :, pj])               # (F, P)
    ba = b_emb[pj, 0, pi]                              # (P,)
    bb = b_emb[pi, 0, pj]                              # (P,)

    # Fold the linear head as one extra "pair": A = x @ w_lin + b_lin, B = 1.
    wa = jnp.concatenate([wa, w_lin], axis=1)                            # (F, P+1)
    wb = jnp.concatenate([wb, jnp.zeros((F, 1), wb.dtype)], axis=1)
    ba = jnp.concatenate([ba, b_lin[0]], axis=0)                         # (P+1,)
    bb = jnp.concatenate([bb, jnp.ones((1,), bb.dtype)], axis=0)

    # Zero-pad the pair axis to a lane multiple; padded lanes have A == 0 so they
    # contribute nothing to the reduction.
    Pp = max(128, ((P + 1 + 127) // 128) * 128)
    pad = Pp - (P + 1)
    wa = jnp.pad(wa, ((0, 0), (0, pad)))
    wb = jnp.pad(wb, ((0, 0), (0, pad)))
    ba = jnp.pad(ba, ((0, pad),))
    bb = jnp.pad(bb, ((0, pad),))

    # Transposed (batch-in-lanes) orientation; bf16 weights, f32 biases.
    waT = wa.T.astype(jnp.bfloat16)                    # (Pp, F)
    wbT = wb.T.astype(jnp.bfloat16)                    # (Pp, F)
    ba = ba.reshape(Pp, 1).astype(jnp.float32)
    bb = bb.reshape(Pp, 1).astype(jnp.float32)
    return waT, wbT, ba, bb


def ffm_forward(x, w_lin, b_lin, w_emb, b_emb, *, tile_b=512):
    B, F = x.shape
    K, F2, D = w_emb.shape
    assert F2 == F

    waT, wbT, ba, bb = _prepare_pair_params(w_lin, b_lin, w_emb, b_emb)
    Pp = waT.shape[0]

    # Clamp the batch tile to the 128-rounded batch so small batches don't
    # over-pad / over-DMA; keep it lane-dense (multiple of 128).
    tile_b = min(tile_b, max(128, ((B + 127) // 128) * 128))
    assert tile_b % 128 == 0

    # Ragged batch: pad up to a whole number of lane-dense tiles (padded columns
    # produce finite garbage that is sliced off below).
    n_tiles = pl.cdiv(B, tile_b)
    B_pad = n_tiles * tile_b
    xT = jnp.pad(x.T.astype(jnp.bfloat16), ((0, 0), (0, B_pad - B)))     # (F, B_pad)

    out = pl.pallas_call(
        ffm_pair_kernel,
        out_shape=jax.ShapeDtypeStruct((1, B_pad), jnp.float32),
        grid=(n_tiles,),
        in_specs=[
            pl.BlockSpec((F, tile_b), lambda i: (0, i)),   # x^T batch tile
            pl.BlockSpec((Pp, F), lambda i: (0, 0)),       # W_A^T (resident)
            pl.BlockSpec((Pp, F), lambda i: (0, 0)),       # W_B^T (resident)
            pl.BlockSpec((Pp, 1), lambda i: (0, 0)),       # b_A
            pl.BlockSpec((Pp, 1), lambda i: (0, 0)),       # b_B
        ],
        out_specs=pl.BlockSpec((1, tile_b), lambda i: (0, i)),
        compiler_params=pltpu.CompilerParams(dimension_semantics=("parallel",)),
    )(xT, waT, wbT, ba, bb)

    return out[0, :B].reshape(B, 1)


def reference_forward(x, w_lin, b_lin, w_emb, b_emb):
    """Pure-JAX reference mirroring the PyTorch module (binary case)."""
    K = w_emb.shape[0]
    lin = x @ w_lin + b_lin                                   # (B, 1)
    es = [x @ w_emb[k] + b_emb[k] for k in range(K)]          # each (B, D)
    ffm = jnp.zeros_like(lin)
    for i in range(K - 1):
        for j in range(i + 1, K):
            ffm = ffm + es[j][:, i:i + 1] * es[i][:, j:j + 1]
    return jax.nn.sigmoid(lin + ffm)


if __name__ == "__main__":
    # Small shapes consistent with the module (n_classes=2 branch).
    B = 200                   # deliberately ragged: exercises pad-to-tile path
    n_features = 16
    embed_dim = 16
    n_latent_factors = 8      # embed_dim >= n_latent_factors required by FFM indexing

    key = jax.random.PRNGKey(0)
    kx, klw, klb, kew, keb = jax.random.split(key, 5)

    # Deterministic "PyTorch-like" uniform(-1/sqrt(fan_in), 1/sqrt(fan_in)) init.
    bound = 1.0 / (n_features ** 0.5)
    x = jax.random.normal(kx, (B, n_features), dtype=jnp.float32)
    w_lin = jax.random.uniform(klw, (n_features, 1), jnp.float32, -bound, bound)
    b_lin = jax.random.uniform(klb, (1, 1), jnp.float32, -bound, bound)
    w_emb = jax.random.uniform(
        kew, (n_latent_factors, n_features, embed_dim), jnp.float32, -bound, bound)
    b_emb = jax.random.uniform(
        keb, (n_latent_factors, 1, embed_dim), jnp.float32, -bound, bound)

    out = jax.block_until_ready(ffm_forward(x, w_lin, b_lin, w_emb, b_emb, tile_b=512))
    assert out.shape == (B, 1)

    # Tight check against a reference that uses the same bf16-rounded operands
    # (f32 biases / f32 accumulation), plus a loose sanity check vs pure f32.
    r = lambda a: a.astype(jnp.bfloat16).astype(jnp.float32)
    ref_bf16 = reference_forward(r(x), r(w_lin), b_lin, r(w_emb), b_emb)
    ref_f32 = reference_forward(x, w_lin, b_lin, w_emb, b_emb)
    assert jnp.allclose(out, ref_bf16, atol=2e-3, rtol=2e-3), \
        float(jnp.max(jnp.abs(out - ref_bf16)))
    assert float(jnp.max(jnp.abs(out - ref_f32))) < 0.1

    print("KERNEL_OK")
</pallas_src>

<mosaic_0001>
module attributes {stable_mosaic.version = 11 : i64} {
  func.func @ffm_pair_kernel(%arg0: i32, %arg1: memref<16x256xbf16, #tpu.memory_space<vmem>>, %arg2: memref<128x16xbf16, #tpu.memory_space<vmem>>, %arg3: memref<128x16xbf16, #tpu.memory_space<vmem>>, %arg4: memref<128x1xf32, #tpu.memory_space<vmem>>, %arg5: memref<128x1xf32, #tpu.memory_space<vmem>>, %arg6: memref<1x256xf32, #tpu.memory_space<vmem>>) attributes {dimension_semantics = [#tpu.dimension_semantics<parallel>], iteration_bounds = array<i64: 1>, scalar_prefetch = 0 : i64, scratch_operands = 0 : i64, tpu.core_type = #tpu.core_type<tc>, window_params = [{transform_indices = @transform_0, window_bounds = array<i64: 16, 256>}, {pipeline_mode = #tpu.pipeline_mode<synchronous>, transform_indices = @transform_1, window_bounds = array<i64: 128, 16>}, {pipeline_mode = #tpu.pipeline_mode<synchronous>, transform_indices = @transform_2, window_bounds = array<i64: 128, 16>}, {pipeline_mode = #tpu.pipeline_mode<synchronous>, transform_indices = @transform_3, window_bounds = array<i64: 128, 1>}, {pipeline_mode = #tpu.pipeline_mode<synchronous>, transform_indices = @transform_4, window_bounds = array<i64: 128, 1>}, {transform_indices = @transform_5, window_bounds = array<i64: 1, 256>}]} {
    %c0 = arith.constant 0 : index
    %c0_0 = arith.constant 0 : index
    %0 = vector.load %arg1[%c0, %c0_0] : memref<16x256xbf16, #tpu.memory_space<vmem>>, vector<16x256xbf16>
    %c0_1 = arith.constant 0 : index
    %c0_2 = arith.constant 0 : index
    %1 = vector.load %arg2[%c0_1, %c0_2] : memref<128x16xbf16, #tpu.memory_space<vmem>>, vector<128x16xbf16>
    %cst = arith.constant dense<0.000000e+00> : vector<128x256xf32>
    %2 = tpu.matmul %1, %0, %cst {dimension_numbers = #tpu.dot_dimension_numbers<[1], [0], [0], [1], [0, 0, 1, 1], [], []>} : vector<128x16xbf16>, vector<16x256xbf16>, vector<128x256xf32> -> vector<128x256xf32>
    %c0_3 = arith.constant 0 : index
    %c0_4 = arith.constant 0 : index
    %3 = vector.load %arg4[%c0_3, %c0_4] : memref<128x1xf32, #tpu.memory_space<vmem>>, vector<128x1xf32>
    %4 = vector.broadcast %3 : vector<128x1xf32> to vector<128x256xf32>
    %5 = arith.addf %2, %4 : vector<128x256xf32>
    %c0_5 = arith.constant 0 : index
    %c0_6 = arith.constant 0 : index
    %6 = vector.load %arg3[%c0_5, %c0_6] : memref<128x16xbf16, #tpu.memory_space<vmem>>, vector<128x16xbf16>
    %cst_7 = arith.constant dense<0.000000e+00> : vector<128x256xf32>
    %7 = tpu.matmul %6, %0, %cst_7 {dimension_numbers = #tpu.dot_dimension_numbers<[1], [0], [0], [1], [0, 0, 1, 1], [], []>} : vector<128x16xbf16>, vector<16x256xbf16>, vector<128x256xf32> -> vector<128x256xf32>
    %c0_8 = arith.constant 0 : index
    %c0_9 = arith.constant 0 : index
    %8 = vector.load %arg5[%c0_8, %c0_9] : memref<128x1xf32, #tpu.memory_space<vmem>>, vector<128x1xf32>
    %9 = vector.broadcast %8 : vector<128x1xf32> to vector<128x256xf32>
    %10 = arith.addf %7, %9 : vector<128x256xf32>
    %11 = arith.mulf %5, %10 : vector<128x256xf32>
    %cst_10 = arith.constant dense<0.000000e+00> : vector<256xf32>
    %12 = vector.multi_reduction <add>, %11, %cst_10 [0] : vector<128x256xf32> to vector<256xf32>
    %13 = vector.shape_cast %12 : vector<256xf32> to vector<1x256xf32>
    %14 = arith.negf %13 : vector<1x256xf32>
    %15 = math.exp %14 : vector<1x256xf32>
    %cst_11 = arith.constant 1.000000e+00 : f32
    %16 = vector.broadcast %cst_11 : f32 to vector<1x256xf32>
    %17 = arith.addf %16, %15 : vector<1x256xf32>
    %18 = arith.divf %16, %17 : vector<1x256xf32>
    %c0_12 = arith.constant 0 : index
    %c0_13 = arith.constant 0 : index
    %19 = vector.load %arg6[%c0_12, %c0_13] : memref<1x256xf32, #tpu.memory_space<vmem>>, vector<1x256xf32>
    tpu.vector_store %arg6[%c0_12, %c0_13], %18 {strides = array<i32>} : memref<1x256xf32, #tpu.memory_space<vmem>>, vector<1x256xf32>,
    return
  }
  func.func @transform_0(%arg0: i32) -> (i32, i32) {
    %c0_i32 = arith.constant 0 : i32
    %c0_i32_0 = arith.constant 0 : i32
    return %c0_i32, %arg0 : i32, i32
  }
  func.func @transform_1(%arg0: i32) -> (i32, i32) {
    %c0_i32 = arith.constant 0 : i32
    %c0_i32_0 = arith.constant 0 : i32
    %c0_i32_1 = arith.constant 0 : i32
    return %c0_i32, %c0_i32_0 : i32, i32
  }
  func.func @transform_2(%arg0: i32) -> (i32, i32) {
    %c0_i32 = arith.constant 0 : i32
    %c0_i32_0 = arith.constant 0 : i32
    %c0_i32_1 = arith.constant 0 : i32
    return %c0_i32, %c0_i32_0 : i32, i32
  }
  func.func @transform_3(%arg0: i32) -> (i32, i32) {
    %c0_i32 = arith.constant 0 : i32
    %c0_i32_0 = arith.constant 0 : i32
    %c0_i32_1 = arith.constant 0 : i32
    return %c0_i32, %c0_i32_0 : i32, i32
  }
  func.func @transform_4(%arg0: i32) -> (i32, i32) {
    %c0_i32 = arith.constant 0 : i32
    %c0_i32_0 = arith.constant 0 : i32
    %c0_i32_1 = arith.constant 0 : i32
    return %c0_i32, %c0_i32_0 : i32, i32
  }
  func.func @transform_5(%arg0: i32) -> (i32, i32) {
    %c0_i32 = arith.constant 0 : i32
    %c0_i32_0 = arith.constant 0 : i32
    return %c0_i32, %arg0 : i32, i32
  }
}

</mosaic_0001>

<llo_original>
// kernel: tpu_custom_call.1
$region0: #{tpu_custom_call.1}
  #allocation0 [shape = 'u32[]', space=smem, size = 0x4, offset = 0x4, fixed_abs, tag = 'smem constant byte address 0x4 - core index']
  #allocation1 [shape = 'u32[144,128]{1,0:T(1,128)}', space=vmem, size = 0x12000, scoped, tag = 'internal scratch']
  %s0 = inlined_call_operand.vmem [shape: bf16[16,256], index: 0, kind: input, shape index: {}]
  %s1 = inlined_call_operand.vmem [shape: bf16[128,16], index: 1, kind: input, shape index: {}]
  %s2 = inlined_call_operand.vmem [shape: bf16[128,16], index: 2, kind: input, shape index: {}]
  %s3 = inlined_call_operand.vmem [shape: f32[128,1], index: 3, kind: input, shape index: {}]
  %s4 = inlined_call_operand.vmem [shape: f32[128,1], index: 4, kind: input, shape index: {}]
  %s5 = inlined_call_operand.hbm [shape: f32[1,256], index: 5, kind: output, shape index: {}]
  %s6 = sld [smem:[#allocation0]]
  $region30: #{tpu_custom_call.1} parent=0
    _
  %s8 = ssub.s32 1, %s6
  %s9 = scalar_select 0, %s8, %s6
  $region1: #{tpu_custom_call.1} parent=0
    #allocation2 [shape = 'u8[1024]{0}', space=vmem, size = 0x400, scoped, tag = 'output window, operand 0, single buffered']
    #allocation3 [shape = 's32[1]{0}', space=sflag, size = 0x4, scoped, tag = 'scoped memory for tpu_custom_call.1']
    %10 = vsyncpa [#allocation3], 0
    // Predicated region
    $region2: #{tpu_custom_call.1} parent=1 // pred_check
      _
    $region3: #{tpu_custom_call.1} parent=1 // pred_check_branch
      %12 = sbr.rel (0) target = $region5
    $region4: #{tpu_custom_call.1} parent=1 // pred_region
      _
    $region5: #{tpu_custom_call.1} parent=1 // pred_fallthru
      _
    // Predicated region
    $region6: #{tpu_custom_call.1} parent=1 // pred_check
      _
    $region7: #{tpu_custom_call.1} parent=1 // pred_check_branch
      %14 = sbr.rel (0) target = $region9
    $region8: #{tpu_custom_call.1} parent=1 // pred_region
      _
    $region9: #{tpu_custom_call.1} parent=1 // pred_fallthru
      _
    // Predicated region
    $region10: #{tpu_custom_call.1} parent=1 // pred_check
      _
    $region11: #{tpu_custom_call.1} parent=1 // pred_check_branch
      %16 = sbr.rel (0) target = $region13
    $region12: #{tpu_custom_call.1} parent=1 // pred_region
      _
    $region13: #{tpu_custom_call.1} parent=1 // pred_fallthru
      _
    // Predicated region
    $region14: #{tpu_custom_call.1} parent=1 // pred_check
      _
    $region15: #{tpu_custom_call.1} parent=1 // pred_check_branch
      %18 = sbr.rel (0) target = $region17
    $region16: #{tpu_custom_call.1} parent=1 // pred_region
      _
    $region17: #{tpu_custom_call.1} parent=1 // pred_fallthru
      _
    // Predicated region
    $region18: #{tpu_custom_call.1} parent=1 // pred_check
      _
    $region19: #{tpu_custom_call.1} parent=1 // pred_check_branch
      %20 = sbr.rel (0) target = $region21
    $region20: #{tpu_custom_call.1} parent=1 // pred_region
      _
    $region21: #{tpu_custom_call.1} parent=1 // pred_fallthru
      _
    %v22 = vld [vmem:[%s0] sm:$0xff]
    %v23 = vld [vmem:[%s0 + $0x8] sm:$0xff]
    %v24 = vld [vmem:[%s1] sm:$0xf]
    %v25 = vld [vmem:[%s1 + $0x4] sm:$0xf]
    %v26 = vld [vmem:[%s1 + $0x8] sm:$0xf]
    %v27 = vld [vmem:[%s1 + $0xc] sm:$0xf]
    %v28 = vld [vmem:[%s1 + $0x10] sm:$0xf]
    %v29 = vld [vmem:[%s1 + $0x14] sm:$0xf]
    %v30 = vld [vmem:[%s1 + $0x18] sm:$0xf]
    %v31 = vld [vmem:[%s1 + $0x1c] sm:$0xf]
    %v32 = vld [vmem:[%s1 + $0x20] sm:$0xf]
    %v33 = vld [vmem:[%s1 + $0x24] sm:$0xf]
    %v34 = vld [vmem:[%s1 + $0x28] sm:$0xf]
    %v35 = vld [vmem:[%s1 + $0x2c] sm:$0xf]
    %v36 = vld [vmem:[%s1 + $0x30] sm:$0xf]
    %v37 = vld [vmem:[%s1 + $0x34] sm:$0xf]
    %v38 = vld [vmem:[%s1 + $0x38] sm:$0xf]
    %v39 = vld [vmem:[%s1 + $0x3c] sm:$0xf]
    %v40 = vld [vmem:[%s3] sm:$0xff]
    %v41 = vld [vmem:[%s3 + $0x8] sm:$0xff]
    %v42 = vld [vmem:[%s3 + $0x10] sm:$0xff]
    %v43 = vld [vmem:[%s3 + $0x18] sm:$0xff]
    %v44 = vld [vmem:[%s3 + $0x20] sm:$0xff]
    %v45 = vld [vmem:[%s3 + $0x28] sm:$0xff]
    %v46 = vld [vmem:[%s3 + $0x30] sm:$0xff]
    %v47 = vld [vmem:[%s3 + $0x38] sm:$0xff]
    %v48 = vld [vmem:[%s3 + $0x40] sm:$0xff]
    %v49 = vld [vmem:[%s3 + $0x48] sm:$0xff]
    %v50 = vld [vmem:[%s3 + $0x50] sm:$0xff]
    %v51 = vld [vmem:[%s3 + $0x58] sm:$0xff]
    %v52 = vld [vmem:[%s3 + $0x60] sm:$0xff]
    %v53 = vld [vmem:[%s3 + $0x68] sm:$0xff]
    %v54 = vld [vmem:[%s3 + $0x70] sm:$0xff]
    %v55 = vld [vmem:[%s3 + $0x78] sm:$0xff]
    %57 = vset.pattern.permute.xlu0 0
    %58 = vperm.xlu0 %57, %v40
    %v59 = vpop.permute.xlu0 %58
    %62 = vset.pattern.permute.xlu0 0
    %63 = vperm.xlu0 %62, %v41
    %v64 = vpop.permute.xlu0 %63
    %67 = vset.pattern.permute.xlu0 0
    %68 = vperm.xlu0 %67, %v42
    %v69 = vpop.permute.xlu0 %68
    %72 = vset.pattern.permute.xlu0 0
    %73 = vperm.xlu0 %72, %v43
    %v74 = vpop.permute.xlu0 %73
    %77 = vset.pattern.permute.xlu0 0
    %78 = vperm.xlu0 %77, %v44
    %v79 = vpop.permute.xlu0 %78
    %82 = vset.pattern.permute.xlu0 0
    %83 = vperm.xlu0 %82, %v45
    %v84 = vpop.permute.xlu0 %83
    %87 = vset.pattern.permute.xlu0 0
    %88 = vperm.xlu0 %87, %v46
    %v89 = vpop.permute.xlu0 %88
    %92 = vset.pattern.permute.xlu0 0
    %93 = vperm.xlu0 %92, %v47
    %v94 = vpop.permute.xlu0 %93
    %97 = vset.pattern.permute.xlu0 0
    %98 = vperm.xlu0 %97, %v48
    %v99 = vpop.permute.xlu0 %98
    %102 = vset.pattern.permute.xlu0 0
    %103 = vperm.xlu0 %102, %v49
    %v104 = vpop.permute.xlu0 %103
    %107 = vset.pattern.permute.xlu0 0
    %108 = vperm.xlu0 %107, %v50
    %v109 = vpop.permute.xlu0 %108
    %112 = vset.pattern.permute.xlu0 0
    %113 = vperm.xlu0 %112, %v51
    %v114 = vpop.permute.xlu0 %113
    %117 = vset.pattern.permute.xlu0 0
    %118 = vperm.xlu0 %117, %v52
    %v119 = vpop.permute.xlu0 %118
    %122 = vset.pattern.permute.xlu0 0
    %123 = vperm.xlu0 %122, %v53
    %v124 = vpop.permute.xlu0 %123
    %127 = vset.pattern.permute.xlu0 0
    %128 = vperm.xlu0 %127, %v54
    %v129 = vpop.permute.xlu0 %128
    %132 = vset.pattern.permute.xlu0 0
    %133 = vperm.xlu0 %132, %v55
    %v134 = vpop.permute.xlu0 %133
    %v152 = vunpack.c.l.b16 %v24
    %v153 = vunpack.c.l.b16 %v25
    %v154 = vunpack.c.l.b16 %v26
    %v155 = vunpack.c.l.b16 %v27
    %v156 = vunpack.c.l.b16 %v28
    %v157 = vunpack.c.l.b16 %v29
    %v158 = vunpack.c.l.b16 %v30
    %v159 = vunpack.c.l.b16 %v31
    %v160 = vunpack.c.l.b16 %v32
    %v161 = vunpack.c.l.b16 %v33
    %v162 = vunpack.c.l.b16 %v34
    %v163 = vunpack.c.l.b16 %v35
    %v164 = vunpack.c.l.b16 %v36
    %v165 = vunpack.c.l.b16 %v37
    %v166 = vunpack.c.l.b16 %v38
    %v167 = vunpack.c.l.b16 %v39
    %v168 = vpack.c.b16 %v153, %v152
    %v169 = vpack.c.b16 %v155, %v154
    %v170 = vpack.c.b16 %v157, %v156
    %v171 = vpack.c.b16 %v159, %v158
    %v172 = vpack.c.b16 %v161, %v160
    %v173 = vpack.c.b16 %v163, %v162
    %v174 = vpack.c.b16 %v165, %v164
    %v175 = vpack.c.b16 %v167, %v166
    %v178 = vunpack.c.l.b16 %v22
    %v179 = vunpack.c.h.b16 %v22
    %v180 = vunpack.c.l.b16 %v23
    %v181 = vunpack.c.h.b16 %v23
    %v182 = vpack.c.b16 %v180, %v178
    %v183 = vpack.c.b16 %v181, %v179
    %vm186 = vcmask 130048
    %v188 = vsel %vm186, %v168, 0
    %v191 = vsel %vm186, %v169, 0
    %v194 = vsel %vm186, %v170, 0
    %v197 = vsel %vm186, %v171, 0
    %v200 = vsel %vm186, %v172, 0
    %v203 = vsel %vm186, %v173, 0
    %v206 = vsel %vm186, %v174, 0
    %v209 = vsel %vm186, %v175, 0
    %211 = vmatprep.subr.bf16.mxu0 %v183
    %212 = vmatpush1.bf16.msra.mxu0 %v182
    %213 = vmatprep.subr.bf16.mxu0 0
    %214 = vmatpush1.bf16.msra.mxu0 0
    %215 = vmatprep.subr.bf16.mxu0 0
    %216 = vmatpush1.bf16.msra.mxu0 0
    %217 = vmatprep.subr.bf16.mxu0 0
    %218 = vmatpush1.bf16.msra.mxu0 0
    %219 = vmatprep.subr.bf16.mxu0 0
    %220 = vmatpush1.bf16.msra.mxu0 0
    %221 = vmatprep.subr.bf16.mxu0 0
    %222 = vmatpush1.bf16.msra.mxu0 0
    %223 = vmatprep.subr.bf16.mxu0 0
    %224 = vmatpush1.bf16.msra.mxu0 0
    %225 = vmatprep.subr.bf16.mxu0 0
    %226 = vmatpush1.bf16.msra.mxu0 0
    %227 = vmatprep.subr.bf16.mxu0 0
    %228 = vmatpush1.bf16.msra.mxu0 0
    %229 = vmatprep.subr.bf16.mxu0 0
    %230 = vmatpush1.bf16.msra.mxu0 0
    %231 = vmatprep.subr.bf16.mxu0 0
    %232 = vmatpush1.bf16.msra.mxu0 0
    %233 = vmatprep.subr.bf16.mxu0 0
    %234 = vmatpush1.bf16.msra.mxu0 0
    %235 = vmatprep.subr.bf16.mxu0 0
    %236 = vmatpush1.bf16.msra.mxu0 0
    %237 = vmatprep.subr.bf16.mxu0 0
    %238 = vmatpush1.bf16.msra.mxu0 0
    %239 = vmatprep.subr.bf16.mxu0 0
    %240 = vmatpush1.bf16.msra.mxu0 0
    %241 = vmatprep.subr.bf16.mxu0 0
    %242 = vmatpush1.bf16.msra.mxu0 0
    %243 = vmatprep.mubr.bf16.mxu0 0
    %244 = vmatmul.mubr.bf16.gmra.mrb[0].mxu0 %v188
    %v245 = vpop.f32.mrb[0].mxu0
    %v246 = vadd.f32 %v59, %v245
    %v247 = vpop.f32.mrb[0].mxu0
    %v248 = vadd.f32 %v59, %v247
    %v249 = vpop.f32.mrb[0].mxu0
    %v250 = vadd.f32 %v64, %v249
    %v251 = vpop.f32.mrb[0].mxu0
    %v252 = vadd.f32 %v64, %v251
    %253 = vmatprep.mubr.bf16.mxu0 0
    %254 = vmatmul.mubr.bf16.gmra.mrb[0].mxu0 %v191
    %v255 = vpop.f32.mrb[0].mxu0
    %v256 = vadd.f32 %v69, %v255
    %v257 = vpop.f32.mrb[0].mxu0
    %v258 = vadd.f32 %v69, %v257
    %v259 = vpop.f32.mrb[0].mxu0
    %v260 = vadd.f32 %v74, %v259
    %v261 = vpop.f32.mrb[0].mxu0
    %v262 = vadd.f32 %v74, %v261
    %263 = vmatprep.mubr.bf16.mxu0 0
    %264 = vmatmul.mubr.bf16.gmra.mrb[0].mxu0 %v194
    %v265 = vpop.f32.mrb[0].mxu0
    %v266 = vadd.f32 %v79, %v265
    %v267 = vpop.f32.mrb[0].mxu0
    %v268 = vadd.f32 %v79, %v267
    %v269 = vpop.f32.mrb[0].mxu0
    %v270 = vadd.f32 %v84, %v269
    %v271 = vpop.f32.mrb[0].mxu0
    %v272 = vadd.f32 %v84, %v271
    %273 = vmatprep.mubr.bf16.mxu0 0
    %274 = vmatmul.mubr.bf16.gmra.mrb[0].mxu0 %v197
    %v275 = vpop.f32.mrb[0].mxu0
    %v276 = vadd.f32 %v89, %v275
    %v277 = vpop.f32.mrb[0].mxu0
    %v278 = vadd.f32 %v89, %v277
    %v279 = vpop.f32.mrb[0].mxu0
    %v280 = vadd.f32 %v94, %v279
    %v281 = vpop.f32.mrb[0].mxu0
    %v282 = vadd.f32 %v94, %v281
    %283 = vmatprep.mubr.bf16.mxu0 0
    %284 = vmatmul.mubr.bf16.gmra.mrb[0].mxu0 %v200
    %v285 = vpop.f32.mrb[0].mxu0
    %v286 = vadd.f32 %v99, %v285
    %v287 = vpop.f32.mrb[0].mxu0
    %v288 = vadd.f32 %v99, %v287
    %v289 = vpop.f32.mrb[0].mxu0
    %v290 = vadd.f32 %v104, %v289
    %v291 = vpop.f32.mrb[0].mxu0
    %v292 = vadd.f32 %v104, %v291
    %293 = vmatprep.mubr.bf16.mxu0 0
    %294 = vmatmul.mubr.bf16.gmra.mrb[0].mxu0 %v203
    %v295 = vpop.f32.mrb[0].mxu0
    %v296 = vadd.f32 %v109, %v295
    %v297 = vpop.f32.mrb[0].mxu0
    %v298 = vadd.f32 %v109, %v297
    %v299 = vpop.f32.mrb[0].mxu0
    %v300 = vadd.f32 %v114, %v299
    %v301 = vpop.f32.mrb[0].mxu0
    %v302 = vadd.f32 %v114, %v301
    %303 = vmatprep.mubr.bf16.mxu0 0
    %304 = vmatmul.mubr.bf16.gmra.mrb[0].mxu0 %v206
    %v305 = vpop.f32.mrb[0].mxu0
    %v306 = vadd.f32 %v119, %v305
    %v307 = vpop.f32.mrb[0].mxu0
    %v308 = vadd.f32 %v119, %v307
    %v309 = vpop.f32.mrb[0].mxu0
    %v310 = vadd.f32 %v124, %v309
    %v311 = vpop.f32.mrb[0].mxu0
    %v312 = vadd.f32 %v124, %v311
    %313 = vmatprep.mubr.bf16.mxu0 0
    %314 = vmatmul.mubr.bf16.gmra.mrb[0].mxu0 %v209
    %v315 = vpop.f32.mrb[0].mxu0
    %v316 = vadd.f32 %v129, %v315
    %v317 = vpop.f32.mrb[0].mxu0
    %v318 = vadd.f32 %v129, %v317
    %v319 = vpop.f32.mrb[0].mxu0
    %v320 = vadd.f32 %v134, %v319
    %v321 = vpop.f32.mrb[0].mxu0
    %v322 = vadd.f32 %v134, %v321
    %323 = vdwg.mxu0
    %v324 = vld [vmem:[%s2] sm:$0xf]
    %v325 = vld [vmem:[%s2 + $0x4] sm:$0xf]
    %v326 = vld [vmem:[%s2 + $0x8] sm:$0xf]
    %v327 = vld [vmem:[%s2 + $0xc] sm:$0xf]
    %v328 = vld [vmem:[%s2 + $0x10] sm:$0xf]
    %v329 = vld [vmem:[%s2 + $0x14] sm:$0xf]
    %v330 = vld [vmem:[%s2 + $0x18] sm:$0xf]
    %v331 = vld [vmem:[%s2 + $0x1c] sm:$0xf]
    %v332 = vld [vmem:[%s2 + $0x20] sm:$0xf]
    %v333 = vld [vmem:[%s2 + $0x24] sm:$0xf]
    %v334 = vld [vmem:[%s2 + $0x28] sm:$0xf]
    %v335 = vld [vmem:[%s2 + $0x2c] sm:$0xf]
    %v336 = vld [vmem:[%s2 + $0x30] sm:$0xf]
    %v337 = vld [vmem:[%s2 + $0x34] sm:$0xf]
    %v338 = vld [vmem:[%s2 + $0x38] sm:$0xf]
    %v339 = vld [vmem:[%s2 + $0x3c] sm:$0xf]
    %v340 = vld [vmem:[%s4] sm:$0xff]
    %v341 = vld [vmem:[%s4 + $0x8] sm:$0xff]
    %v342 = vld [vmem:[%s4 + $0x10] sm:$0xff]
    %v343 = vld [vmem:[%s4 + $0x18] sm:$0xff]
    %v344 = vld [vmem:[%s4 + $0x20] sm:$0xff]
    %v345 = vld [vmem:[%s4 + $0x28] sm:$0xff]
    %v346 = vld [vmem:[%s4 + $0x30] sm:$0xff]
    %v347 = vld [vmem:[%s4 + $0x38] sm:$0xff]
    %v348 = vld [vmem:[%s4 + $0x40] sm:$0xff]
    %v349 = vld [vmem:[%s4 + $0x48] sm:$0xff]
    %v350 = vld [vmem:[%s4 + $0x50] sm:$0xff]
    %v351 = vld [vmem:[%s4 + $0x58] sm:$0xff]
    %v352 = vld [vmem:[%s4 + $0x60] sm:$0xff]
    %v353 = vld [vmem:[%s4 + $0x68] sm:$0xff]
    %v354 = vld [vmem:[%s4 + $0x70] sm:$0xff]
    %v355 = vld [vmem:[%s4 + $0x78] sm:$0xff]
    %357 = vset.pattern.permute.xlu0 0
    %358 = vperm.xlu0 %357, %v340
    %v359 = vpop.permute.xlu0 %358
    %362 = vset.pattern.permute.xlu0 0
    %363 = vperm.xlu0 %362, %v341
    %v364 = vpop.permute.xlu0 %363
    %367 = vset.pattern.permute.xlu0 0
    %368 = vperm.xlu0 %367, %v342
    %v369 = vpop.permute.xlu0 %368
    %372 = vset.pattern.permute.xlu0 0
    %373 = vperm.xlu0 %372, %v343
    %v374 = vpop.permute.xlu0 %373
    %377 = vset.pattern.permute.xlu0 0
    %378 = vperm.xlu0 %377, %v344
    %v379 = vpop.permute.xlu0 %378
    %382 = vset.pattern.permute.xlu0 0
    %383 = vperm.xlu0 %382, %v345
    %v384 = vpop.permute.xlu0 %383
    %387 = vset.pattern.permute.xlu0 0
    %388 = vperm.xlu0 %387, %v346
    %v389 = vpop.permute.xlu0 %388
    %392 = vset.pattern.permute.xlu0 0
    %393 = vperm.xlu0 %392, %v347
    %v394 = vpop.permute.xlu0 %393
    %397 = vset.pattern.permute.xlu0 0
    %398 = vperm.xlu0 %397, %v348
    %v399 = vpop.permute.xlu0 %398
    %402 = vset.pattern.permute.xlu0 0
    %403 = vperm.xlu0 %402, %v349
    %v404 = vpop.permute.xlu0 %403
    %407 = vset.pattern.permute.xlu0 0
    %408 = vperm.xlu0 %407, %v350
    %v409 = vpop.permute.xlu0 %408
    %412 = vset.pattern.permute.xlu0 0
    %413 = vperm.xlu0 %412, %v351
    %v414 = vpop.permute.xlu0 %413
    %417 = vset.pattern.permute.xlu0 0
    %418 = vperm.xlu0 %417, %v352
    %v419 = vpop.permute.xlu0 %418
    %422 = vset.pattern.permute.xlu0 0
    %423 = vperm.xlu0 %422, %v353
    %v424 = vpop.permute.xlu0 %423
    %427 = vset.pattern.permute.xlu0 0
    %428 = vperm.xlu0 %427, %v354
    %v429 = vpop.permute.xlu0 %428
    %432 = vset.pattern.permute.xlu0 0
    %433 = vperm.xlu0 %432, %v355
    %v434 = vpop.permute.xlu0 %433
    %v452 = vunpack.c.l.b16 %v324
    %v453 = vunpack.c.l.b16 %v325
    %v454 = vunpack.c.l.b16 %v326
    %v455 = vunpack.c.l.b16 %v327
    %v456 = vunpack.c.l.b16 %v328
    %v457 = vunpack.c.l.b16 %v329
    %v458 = vunpack.c.l.b16 %v330
    %v459 = vunpack.c.l.b16 %v331
    %v460 = vunpack.c.l.b16 %v332
    %v461 = vunpack.c.l.b16 %v333
    %v462 = vunpack.c.l.b16 %v334
    %v463 = vunpack.c.l.b16 %v335
    %v464 = vunpack.c.l.b16 %v336
    %v465 = vunpack.c.l.b16 %v337
    %v466 = vunpack.c.l.b16 %v338
    %v467 = vunpack.c.l.b16 %v339
    %v468 = vpack.c.b16 %v453, %v452
    %v469 = vpack.c.b16 %v455, %v454
    %v470 = vpack.c.b16 %v457, %v456
    %v471 = vpack.c.b16 %v459, %v458
    %v472 = vpack.c.b16 %v461, %v460
    %v473 = vpack.c.b16 %v463, %v462
    %v474 = vpack.c.b16 %v465, %v464
    %v475 = vpack.c.b16 %v467, %v466
    %v477 = vsel %vm186, %v468, 0
    %v480 = vsel %vm186, %v469, 0
    %v483 = vsel %vm186, %v470, 0
    %v486 = vsel %vm186, %v471, 0
    %v489 = vsel %vm186, %v472, 0
    %v492 = vsel %vm186, %v473, 0
    %v495 = vsel %vm186, %v474, 0
    %v498 = vsel %vm186, %v475, 0
    %500 = vmatprep.subr.bf16.mxu0 %v183
    %501 = vmatpush1.bf16.msra.mxu0 %v182
    %502 = vmatprep.subr.bf16.mxu0 0
    %503 = vmatpush1.bf16.msra.mxu0 0
    %504 = vmatprep.subr.bf16.mxu0 0
    %505 = vmatpush1.bf16.msra.mxu0 0
    %506 = vmatprep.subr.bf16.mxu0 0
    %507 = vmatpush1.bf16.msra.mxu0 0
    %508 = vmatprep.subr.bf16.mxu0 0
    %509 = vmatpush1.bf16.msra.mxu0 0
    %510 = vmatprep.subr.bf16.mxu0 0
    %511 = vmatpush1.bf16.msra.mxu0 0
    %512 = vmatprep.subr.bf16.mxu0 0
    %513 = vmatpush1.bf16.msra.mxu0 0
    %514 = vmatprep.subr.bf16.mxu0 0
    %515 = vmatpush1.bf16.msra.mxu0 0
    %516 = vmatprep.subr.bf16.mxu0 0
    %517 = vmatpush1.bf16.msra.mxu0 0
    %518 = vmatprep.subr.bf16.mxu0 0
    %519 = vmatpush1.bf16.msra.mxu0 0
    %520 = vmatprep.subr.bf16.mxu0 0
    %521 = vmatpush1.bf16.msra.mxu0 0
    %522 = vmatprep.subr.bf16.mxu0 0
    %523 = vmatpush1.bf16.msra.mxu0 0
    %524 = vmatprep.subr.bf16.mxu0 0
    %525 = vmatpush1.bf16.msra.mxu0 0
    %526 = vmatprep.subr.bf16.mxu0 0
    %527 = vmatpush1.bf16.msra.mxu0 0
    %528 = vmatprep.subr.bf16.mxu0 0
    %529 = vmatpush1.bf16.msra.mxu0 0
    %530 = vmatprep.subr.bf16.mxu0 0
    %531 = vmatpush1.bf16.msra.mxu0 0
    %532 = vmatprep.mubr.bf16.mxu0 0
    %533 = vmatmul.mubr.bf16.gmra.mrb[0].mxu0 %v477
    %v534 = vpop.f32.mrb[0].mxu0
    %v535 = vadd.f32 %v359, %v534
    %v536 = vpop.f32.mrb[0].mxu0
    %v537 = vadd.f32 %v359, %v536
    %v538 = vpop.f32.mrb[0].mxu0
    %v539 = vadd.f32 %v364, %v538
    %v540 = vpop.f32.mrb[0].mxu0
    %v541 = vadd.f32 %v364, %v540
    %542 = vmatprep.mubr.bf16.mxu0 0
    %543 = vmatmul.mubr.bf16.gmra.mrb[0].mxu0 %v480
    %v544 = vpop.f32.mrb[0].mxu0
    %v545 = vadd.f32 %v369, %v544
    %v546 = vpop.f32.mrb[0].mxu0
    %v547 = vadd.f32 %v369, %v546
    %v548 = vpop.f32.mrb[0].mxu0
    %v549 = vadd.f32 %v374, %v548
    %v550 = vpop.f32.mrb[0].mxu0
    %v551 = vadd.f32 %v374, %v550
    %552 = vmatprep.mubr.bf16.mxu0 0
    %553 = vmatmul.mubr.bf16.gmra.mrb[0].mxu0 %v483
    %v554 = vpop.f32.mrb[0].mxu0
    %v555 = vadd.f32 %v379, %v554
    %v556 = vpop.f32.mrb[0].mxu0
    %v557 = vadd.f32 %v379, %v556
    %v558 = vpop.f32.mrb[0].mxu0
    %v559 = vadd.f32 %v384, %v558
    %v560 = vpop.f32.mrb[0].mxu0
    %v561 = vadd.f32 %v384, %v560
    %562 = vmatprep.mubr.bf16.mxu0 0
    %563 = vmatmul.mubr.bf16.gmra.mrb[0].mxu0 %v486
    %v564 = vpop.f32.mrb[0].mxu0
    %v565 = vadd.f32 %v389, %v564
    %v566 = vpop.f32.mrb[0].mxu0
    %v567 = vadd.f32 %v389, %v566
    %v568 = vpop.f32.mrb[0].mxu0
    %v569 = vadd.f32 %v394, %v568
    %v570 = vpop.f32.mrb[0].mxu0
    %v571 = vadd.f32 %v394, %v570
    %572 = vmatprep.mubr.bf16.mxu0 0
    %573 = vmatmul.mubr.bf16.gmra.mrb[0].mxu0 %v489
    %v574 = vpop.f32.mrb[0].mxu0
    %v575 = vadd.f32 %v399, %v574
    %v576 = vpop.f32.mrb[0].mxu0
    %v577 = vadd.f32 %v399, %v576
    %v578 = vpop.f32.mrb[0].mxu0
    %v579 = vadd.f32 %v404, %v578
    %v580 = vpop.f32.mrb[0].mxu0
    %v581 = vadd.f32 %v404, %v580
    %582 = vmatprep.mubr.bf16.mxu0 0
    %583 = vmatmul.mubr.bf16.gmra.mrb[0].mxu0 %v492
    %v584 = vpop.f32.mrb[0].mxu0
    %v585 = vadd.f32 %v409, %v584
    %v586 = vpop.f32.mrb[0].mxu0
    %v587 = vadd.f32 %v409, %v586
    %v588 = vpop.f32.mrb[0].mxu0
    %v589 = vadd.f32 %v414, %v588
    %v590 = vpop.f32.mrb[0].mxu0
    %v591 = vadd.f32 %v414, %v590
    %592 = vmatprep.mubr.bf16.mxu0 0
    %593 = vmatmul.mubr.bf16.gmra.mrb[0].mxu0 %v495
    %v594 = vpop.f32.mrb[0].mxu0
    %v595 = vadd.f32 %v419, %v594
    %v596 = vpop.f32.mrb[0].mxu0
    %v597 = vadd.f32 %v419, %v596
    %v598 = vpop.f32.mrb[0].mxu0
    %v599 = vadd.f32 %v424, %v598
    %v600 = vpop.f32.mrb[0].mxu0
    %v601 = vadd.f32 %v424, %v600
    %602 = vmatprep.mubr.bf16.mxu0 0
    %603 = vmatmul.mubr.bf16.gmra.mrb[0].mxu0 %v498
    %v604 = vpop.f32.mrb[0].mxu0
    %v605 = vadd.f32 %v429, %v604
    %v606 = vpop.f32.mrb[0].mxu0
    %v607 = vadd.f32 %v429, %v606
    %v608 = vpop.f32.mrb[0].mxu0
    %v609 = vadd.f32 %v434, %v608
    %v610 = vpop.f32.mrb[0].mxu0
    %v611 = vadd.f32 %v434, %v610
    %612 = vdwg.mxu0
    %v613 = vmul.f32 %v246, %v535
    %v614 = vmul.f32 %v248, %v537
    %v615 = vmul.f32 %v250, %v539
    %v616 = vmul.f32 %v252, %v541
    %v617 = vmul.f32 %v256, %v545
    %v618 = vmul.f32 %v258, %v547
    %v619 = vmul.f32 %v260, %v549
    %v620 = vmul.f32 %v262, %v551
    %v621 = vmul.f32 %v266, %v555
    %v622 = vmul.f32 %v268, %v557
    %v623 = vmul.f32 %v270, %v559
    %v624 = vmul.f32 %v272, %v561
    %v625 = vmul.f32 %v276, %v565
    %v626 = vmul.f32 %v278, %v567
    %v627 = vmul.f32 %v280, %v569
    %v628 = vmul.f32 %v282, %v571
    %v629 = vmul.f32 %v286, %v575
    %v630 = vmul.f32 %v288, %v577
    %v631 = vmul.f32 %v290, %v579
    %v632 = vmul.f32 %v292, %v581
    %v633 = vmul.f32 %v296, %v585
    %v634 = vmul.f32 %v298, %v587
    %v635 = vmul.f32 %v300, %v589
    %v636 = vmul.f32 %v302, %v591
    %v637 = vmul.f32 %v306, %v595
    %v638 = vmul.f32 %v308, %v597
    %v639 = vmul.f32 %v310, %v599
    %v640 = vmul.f32 %v312, %v601
    %v641 = vmul.f32 %v316, %v605
    %v642 = vmul.f32 %v318, %v607
    %v643 = vmul.f32 %v320, %v609
    %v644 = vmul.f32 %v322, %v611
    %v645 = vadd.f32 %v613, %v615
    %v646 = vadd.f32 %v645, %v617
    %v647 = vadd.f32 %v646, %v619
    %v648 = vadd.f32 %v647, %v621
    %v649 = vadd.f32 %v648, %v623
    %v650 = vadd.f32 %v649, %v625
    %v651 = vadd.f32 %v650, %v627
    %v652 = vadd.f32 %v651, %v629
    %v653 = vadd.f32 %v652, %v631
    %v654 = vadd.f32 %v653, %v633
    %v655 = vadd.f32 %v654, %v635
    %v656 = vadd.f32 %v655, %v637
    %v657 = vadd.f32 %v656, %v639
    %v658 = vadd.f32 %v657, %v641
    %v659 = vadd.f32 %v658, %v643
    %v660 = vrot.slane %v659, 4
    %v661 = vadd.f32 %v659, %v660
    %v662 = vrot.slane %v661, 2
    %v663 = vadd.f32 %v661, %v662
    %v664 = vrot.slane %v663, 1
    %v665 = vadd.f32 %v663, %v664
    %v666 = vadd.f32 %v614, %v616
    %v667 = vadd.f32 %v666, %v618
    %v668 = vadd.f32 %v667, %v620
    %v669 = vadd.f32 %v668, %v622
    %v670 = vadd.f32 %v669, %v624
    %v671 = vadd.f32 %v670, %v626
    %v672 = vadd.f32 %v671, %v628
    %v673 = vadd.f32 %v672, %v630
    %v674 = vadd.f32 %v673, %v632
    %v675 = vadd.f32 %v674, %v634
    %v676 = vadd.f32 %v675, %v636
    %v677 = vadd.f32 %v676, %v638
    %v678 = vadd.f32 %v677, %v640
    %v679 = vadd.f32 %v678, %v642
    %v680 = vadd.f32 %v679, %v644
    %v681 = vrot.slane %v680, 4
    %v682 = vadd.f32 %v680, %v681
    %v683 = vrot.slane %v682, 2
    %v684 = vadd.f32 %v682, %v683
    %v685 = vrot.slane %v684, 1
    %v686 = vadd.f32 %v684, %v685
    %v687 = vxor.u32 %v665, 2147483648
    %v688 = vxor.u32 %v686, 2147483648
    %v689 = vmul.f32 %v687, 1.442695
    %v690 = vpow.pop %v689
    %v691 = vmul.f32 %v688, 1.442695
    %v692 = vpow.pop %v691
    %v693 = vadd.f32 %v690, 1.0
    %v694 = vadd.f32 %v692, 1.0
    %v695 = vrcp.pop %v693
    %v696 = vmul.f32 1.0, %v695
    %v697 = vrcp.pop %v694
    %v698 = vmul.f32 1.0, %v697
    %v701 = vcombine.low %v696, %v698
    %v703 = vunpack.c.l.s4 1966171168
    %v704 = vunpack.c.0.s8 %v703
    %v705 = vlaneseq
    %v706 = vshrl.u32 %v705, 7
    %v707 = vsub.s32 %v704, %v706
    %v708 = vrot.slane %v701, %v707
    %v710 = vunpack.c.l.s4 1966171168
    %v711 = vunpack.c.0.s8 %v710
    %v712 = vlaneseq
    %v713 = vshrl.u32 %v712, 7
    %v714 = vsub.s32 %v711, %v713
    %v715 = vrot.slane %v708, %v714
    %v717 = vlaneseq
    %vm718 = vcmp.ge.s32.totalorder %v717, 0
    %vm719 = vcmp.lt.s32.totalorder %v717, 256
    %vm720 = vmand %vm718, %vm719
    %721 = vst.msk [vmem:[#allocation2] sm:$0x3] %vm720, %v715
    // Predicated region
    $region22: #{tpu_custom_call.1} parent=1 // pred_check
      _
    $region23: #{tpu_custom_call.1} parent=1 // pred_check_branch
      %723 = sbr.rel (0) target = $region25
    $region24: #{tpu_custom_call.1} parent=1 // pred_region
      %s725 = ssub.s32 32, 32
      %726 = vsyncadd [#allocation3], %s725
      %s728 = sshll.u32 [#allocation2], 4
      %s729 = int_to_ptr.vmem [resolvable:$true] %s728
      %731 = dma.vmem_to_hbm [thread:$0]  %s729, 32, %s5, [#allocation3]
    $region25: #{tpu_custom_call.1} parent=1 // pred_fallthru
      _
    // Predicated region
    $region26: #{tpu_custom_call.1} parent=1 // pred_check
      _
    $region27: #{tpu_custom_call.1} parent=1 // pred_check_branch
      %733 = sbr.rel (0) target = $region29
    $region28: #{tpu_custom_call.1} parent=1 // pred_region
      %734 = dma.done [#allocation3], 32
    $region29: #{tpu_custom_call.1} parent=1 // pred_fallthru
      _
    %735 = vsyncpa [#allocation3], 1

</llo_original>
